<compile_context>
chip_gen: v5e
topology: v5e:2x2
jax: 0.10.0
libtpu: 0.0.40
codegen_flags: <defaults>
</compile_context>

<pallas_src>
import functools

import jax
import jax.numpy as jnp
from jax import lax
from jax.experimental import pallas as pl
from jax.experimental.pallas import tpu as pltpu

EPS = 1e-12                 # F.normalize default eps
EPS2 = EPS * EPS
INV_EPS2 = 1.0 / EPS2


def _embedd_loss_kernel(es_ref, et_ref, out_ref, *, n_rows, tm, blocks_per_par):
    p = pl.program_id(0)          # core-parallel axis
    i = pl.program_id(1)          # streaming reduction axis (row-tile steps)

    @pl.when(i == 0)
    def _():
        out_ref[...] = jnp.zeros_like(out_ref)

    es = es_ref[...].astype(jnp.float32)      # (tm, D)
    et = et_ref[...].astype(jnp.float32)

    # Three full-tile products + three exact row reductions (XLU).
    ss = jnp.sum(es * es, axis=-1, keepdims=True)   # (tm, 1)
    tt = jnp.sum(et * et, axis=-1, keepdims=True)
    st = jnp.sum(es * et, axis=-1, keepdims=True)

    # rsqrt(max(ss, eps^2)) == 1 / max(sqrt(ss), eps): exactly F.normalize's clamp.
    inv_s = lax.rsqrt(jnp.maximum(ss, EPS2))
    inv_t = lax.rsqrt(jnp.maximum(tt, EPS2))
    # ss / max(ss, eps^2) computed exactly as min(ss/eps^2, 1): 1 for normal
    # rows, ss/eps^2 for tiny rows, 0 for all-zero / padded rows.
    unit_s = jnp.minimum(ss * INV_EPS2, 1.0)
    unit_t = jnp.minimum(tt * INV_EPS2, 1.0)
    row = unit_s + unit_t - 2.0 * st * (inv_s * inv_t)   # (tm, 1) per-row loss sum

    # In-kernel masking of the ragged row tail (replaces wrapper-side jnp.pad).
    base = (p * blocks_per_par + i) * tm
    rid = base + lax.broadcasted_iota(jnp.int32, row.shape, 0)
    row = jnp.where(rid < n_rows, row, 0.0)

    # Accumulate directly into the resident output block (no VMEM scratch).
    out_ref[...] += jnp.sum(row)


def _input_spec(block_shape, index_map, extra_buffer):
    # Triple-buffer the streamed inputs when there are enough steps to benefit;
    # fall back silently on Pallas versions without pipeline_mode/Buffered.
    if extra_buffer and hasattr(pl, "Buffered"):
        try:
            return pl.BlockSpec(block_shape, index_map,
                                pipeline_mode=pl.Buffered(3))
        except TypeError:
            pass
    return pl.BlockSpec(block_shape, index_map)


def embedd_loss(e_s, e_t, *, num_par=1, vmem_budget_bytes=20 * 1024 * 1024):
    """Pallas TPU implementation of EmbeddLoss.forward.

    e_s, e_t: [N, D] arrays (f32 or bf16). Returns a scalar float32 loss.
    num_par > 1 splits the streaming reduction across TensorCores (v7x).
    """
    assert e_s.shape == e_t.shape and e_s.ndim == 2
    N, D = e_s.shape
    itemsize = max(jnp.dtype(e_s.dtype).itemsize, jnp.dtype(e_t.dtype).itemsize)

    # --- tile sizing: target multi-MiB steps, account for pipeline buffers and
    # the in-kernel f32 intermediates (es, et, one product live at a time). ---
    nbuf = 3                                        # up to triple-buffered inputs
    bytes_per_row = D * (2 * nbuf * itemsize + 4 * 4)
    tm_cap = max(8, int(vmem_budget_bytes // bytes_per_row))
    if N <= tm_cap:
        tm = N                                      # single full-dim block (always legal)
    else:
        tm = min(max(32, (tm_cap // 32) * 32), 8192)

    total_blocks = pl.cdiv(N, tm)
    num_par = max(1, min(num_par, total_blocks))
    blocks_per_par = pl.cdiv(total_blocks, num_par)
    last_block = total_blocks - 1
    extra_buffer = blocks_per_par >= 4

    if num_par == 1:
        in_index = lambda p, i: (i, 0)
    else:
        # Clamp so no block start lands fully past N; the kernel masks by the
        # *logical* row index, so a clamped (duplicate) block contributes 0.
        in_index = lambda p, i: (jnp.minimum(p * blocks_per_par + i, last_block), 0)

    kernel = functools.partial(_embedd_loss_kernel, n_rows=N, tm=tm,
                               blocks_per_par=blocks_per_par)

    outer_sem = pltpu.CORE_PARALLEL if num_par > 1 else "arbitrary"

    partials = pl.pallas_call(
        kernel,
        out_shape=jax.ShapeDtypeStruct((num_par, 1, 1), jnp.float32),
        grid_spec=pltpu.PrefetchScalarGridSpec(
            num_scalar_prefetch=0,
            grid=(num_par, blocks_per_par),
            in_specs=[
                _input_spec((tm, D), in_index, extra_buffer),
                _input_spec((tm, D), in_index, extra_buffer),
            ],
            out_specs=pl.BlockSpec((1, 1, 1), lambda p, i: (p, 0, 0)),
        ),
        compiler_params=pltpu.CompilerParams(
            dimension_semantics=(outer_sem, "arbitrary"),
            vmem_limit_bytes=32 * 1024 * 1024,
        ),
    )(e_s, e_t)

    # Mean over the ORIGINAL element count.
    return jnp.sum(partials) / jnp.float32(N * D)


def embedd_loss_ref(e_s, e_t):
    """Pure-JAX reference mirroring the PyTorch module."""
    def norm(x):
        x = x.astype(jnp.float32)
        n = jnp.sqrt(jnp.sum(x * x, axis=1, keepdims=True))
        return x / jnp.maximum(n, EPS)
    d = norm(e_s) - norm(e_t)
    return jnp.mean(d * d)


if __name__ == "__main__":
    key = jax.random.PRNGKey(0)
    k1, k2, k3, k4, k5, k6 = jax.random.split(key, 6)

    # Case 1: f32, lane-aligned embedding batch (single-block fast path).
    N, D = 16, 128
    e_s = jax.random.normal(k1, (N, D), dtype=jnp.float32)
    e_t = jax.random.normal(k2, (N, D), dtype=jnp.float32)
    loss = jax.block_until_ready(embedd_loss(e_s, e_t))
    ref = jax.block_until_ready(embedd_loss_ref(e_s, e_t))
    assert jnp.allclose(loss, ref, rtol=1e-5, atol=1e-6), (loss, ref)

    # Case 2: bf16 inputs with ragged shapes (native-dtype streaming, full-dim
    # blocks, no padding anywhere; compute is f32 inside the kernel).
    N2, D2 = 10, 96
    f_s = jax.random.normal(k3, (N2, D2), dtype=jnp.float32).astype(jnp.bfloat16)
    f_t = jax.random.normal(k4, (N2, D2), dtype=jnp.float32).astype(jnp.bfloat16)
    loss2 = jax.block_until_ready(embedd_loss(f_s, f_t))
    ref2 = jax.block_until_ready(embedd_loss_ref(f_s, f_t))
    assert jnp.allclose(loss2, ref2, rtol=5e-5, atol=1e-6), (loss2, ref2)

    # Case 3: force multi-step tiling + in-kernel tail masking + resident
    # out_ref accumulation by shrinking the VMEM budget (tm=32, 4 steps,
    # last step partially out of bounds).
    N3, D3 = 100, 128
    g_s = jax.random.normal(k5, (N3, D3), dtype=jnp.float32)
    g_t = jax.random.normal(k6, (N3, D3), dtype=jnp.float32)
    loss3 = jax.block_until_ready(embedd_loss(g_s, g_t,
                                              vmem_budget_bytes=256 * 1024))
    ref3 = jax.block_until_ready(embedd_loss_ref(g_s, g_t))
    assert jnp.allclose(loss3, ref3, rtol=1e-5, atol=1e-6), (loss3, ref3)

    print("KERNEL_OK")
</pallas_src>

<mosaic_0001>
module attributes {stable_mosaic.version = 11 : i64} {
  func.func @_embedd_loss_kernel(%arg0: i32, %arg1: i32, %arg2: memref<16x128xf32, #tpu.memory_space<vmem>>, %arg3: memref<16x128xf32, #tpu.memory_space<vmem>>, %arg4: memref<1x1x1xf32, #tpu.memory_space<vmem>>) attributes {dimension_semantics = [#tpu.dimension_semantics<arbitrary>, #tpu.dimension_semantics<arbitrary>], iteration_bounds = array<i64: 1, 1>, scalar_prefetch = 0 : i64, scratch_operands = 0 : i64, tpu.core_type = #tpu.core_type<tc>, window_params = [{transform_indices = @transform_0, window_bounds = array<i64: 16, 128>}, {transform_indices = @transform_1, window_bounds = array<i64: 16, 128>}, {transform_indices = @transform_2, window_bounds = array<i64: 1, 1, 1>}]} {
    %c0_i32 = arith.constant 0 : i32
    %0 = arith.cmpi eq, %arg1, %c0_i32 : i32
    %1 = arith.extui %0 : i1 to i32
    %c0_i32_0 = arith.constant 0 : i32
    %2 = arith.cmpi ne, %1, %c0_i32_0 : i32
    scf.if %2 {
      %cst_22 = arith.constant 0.000000e+00 : f32
      %52 = vector.broadcast %cst_22 : f32 to vector<1x1x1xf32>
      %c0_23 = arith.constant 0 : index
      %c0_24 = arith.constant 0 : index
      %c0_25 = arith.constant 0 : index
      %53 = vector.load %arg4[%c0_23, %c0_24, %c0_25] : memref<1x1x1xf32, #tpu.memory_space<vmem>>, vector<1x1x1xf32>
      tpu.vector_store %arg4[%c0_23, %c0_24, %c0_25], %52 {strides = array<i32>} : memref<1x1x1xf32, #tpu.memory_space<vmem>>, vector<1x1x1xf32>,
    } else {
    }
    %c0 = arith.constant 0 : index
    %c0_1 = arith.constant 0 : index
    %3 = vector.load %arg2[%c0, %c0_1] : memref<16x128xf32, #tpu.memory_space<vmem>>, vector<16x128xf32>
    %c0_2 = arith.constant 0 : index
    %c0_3 = arith.constant 0 : index
    %4 = vector.load %arg3[%c0_2, %c0_3] : memref<16x128xf32, #tpu.memory_space<vmem>>, vector<16x128xf32>
    %5 = arith.mulf %3, %3 : vector<16x128xf32>
    %cst = arith.constant dense<0.000000e+00> : vector<16xf32>
    %6 = vector.multi_reduction <add>, %5, %cst [1] : vector<16x128xf32> to vector<16xf32>
    %7 = vector.shape_cast %6 : vector<16xf32> to vector<16x1xf32>
    %8 = arith.mulf %4, %4 : vector<16x128xf32>
    %cst_4 = arith.constant dense<0.000000e+00> : vector<16xf32>
    %9 = vector.multi_reduction <add>, %8, %cst_4 [1] : vector<16x128xf32> to vector<16xf32>
    %10 = vector.shape_cast %9 : vector<16xf32> to vector<16x1xf32>
    %11 = arith.mulf %3, %4 : vector<16x128xf32>
    %cst_5 = arith.constant dense<0.000000e+00> : vector<16xf32>
    %12 = vector.multi_reduction <add>, %11, %cst_5 [1] : vector<16x128xf32> to vector<16xf32>
    %13 = vector.shape_cast %12 : vector<16xf32> to vector<16x1xf32>
    %cst_6 = arith.constant 1.000000e-24 : f32
    %14 = vector.broadcast %cst_6 : f32 to vector<16x1xf32>
    %15 = arith.maximumf %7, %14 : vector<16x1xf32>
    %16 = math.rsqrt %15 : vector<16x1xf32>
    %cst_7 = arith.constant 1.000000e-24 : f32
    %17 = vector.broadcast %cst_7 : f32 to vector<16x1xf32>
    %18 = arith.maximumf %10, %17 : vector<16x1xf32>
    %19 = math.rsqrt %18 : vector<16x1xf32>
    %cst_8 = arith.constant 1.000000e+24 : f32
    %20 = vector.broadcast %cst_8 : f32 to vector<16x1xf32>
    %21 = arith.mulf %7, %20 : vector<16x1xf32>
    %cst_9 = arith.constant 1.000000e+00 : f32
    %22 = vector.broadcast %cst_9 : f32 to vector<16x1xf32>
    %23 = arith.minimumf %21, %22 : vector<16x1xf32>
    %cst_10 = arith.constant 1.000000e+24 : f32
    %24 = vector.broadcast %cst_10 : f32 to vector<16x1xf32>
    %25 = arith.mulf %10, %24 : vector<16x1xf32>
    %cst_11 = arith.constant 1.000000e+00 : f32
    %26 = vector.broadcast %cst_11 : f32 to vector<16x1xf32>
    %27 = arith.minimumf %25, %26 : vector<16x1xf32>
    %28 = arith.addf %23, %27 : vector<16x1xf32>
    %cst_12 = arith.constant 2.000000e+00 : f32
    %29 = vector.broadcast %cst_12 : f32 to vector<16x1xf32>
    %30 = arith.mulf %29, %13 : vector<16x1xf32>
    %31 = arith.mulf %16, %19 : vector<16x1xf32>
    %32 = arith.mulf %30, %31 : vector<16x1xf32>
    %33 = arith.subf %28, %32 : vector<16x1xf32>
    %c1_i32 = arith.constant 1 : i32
    %34 = arith.muli %arg0, %c1_i32 : i32
    %35 = arith.addi %34, %arg1 : i32
    %c16_i32 = arith.constant 16 : i32
    %36 = arith.muli %35, %c16_i32 : i32
    %37 = tpu.iota {dimensions = array<i32: 0>} : vector<16x1xi32>
    %38 = vector.broadcast %36 : i32 to vector<16x1xi32>
    %39 = arith.addi %38, %37 : vector<16x1xi32>
    %c16_i32_13 = arith.constant 16 : i32
    %40 = vector.broadcast %c16_i32_13 : i32 to vector<16x1xi32>
    %41 = arith.cmpi slt, %39, %40 : vector<16x1xi32>
    %cst_14 = arith.constant 0.000000e+00 : f32
    %42 = vector.broadcast %cst_14 : f32 to vector<16x1xf32>
    %43 = arith.select %41, %33, %42 : vector<16x1xi1>, vector<16x1xf32>
    %c0_15 = arith.constant 0 : index
    %c0_16 = arith.constant 0 : index
    %c0_17 = arith.constant 0 : index
    %44 = vector.load %arg4[%c0_15, %c0_16, %c0_17] : memref<1x1x1xf32, #tpu.memory_space<vmem>>, vector<1x1x1xf32>
    %45 = vector.shape_cast %43 : vector<16x1xf32> to vector<1x16x1xf32>
    %cst_18 = arith.constant dense<0.000000e+00> : vector<1xf32>
    %46 = vector.multi_reduction <add>, %45, %cst_18 [1, 2] : vector<1x16x1xf32> to vector<1xf32>
    %47 = vector.shape_cast %46 : vector<1xf32> to vector<1x1x1xf32>
    %48 = vector.extract %47[0, 0, 0] : f32 from vector<1x1x1xf32>
    %49 = vector.broadcast %48 : f32 to vector<1x1x1xf32>
    %50 = arith.addf %44, %49 : vector<1x1x1xf32>
    %c0_19 = arith.constant 0 : index
    %c0_20 = arith.constant 0 : index
    %c0_21 = arith.constant 0 : index
    %51 = vector.load %arg4[%c0_19, %c0_20, %c0_21] : memref<1x1x1xf32, #tpu.memory_space<vmem>>, vector<1x1x1xf32>
    tpu.vector_store %arg4[%c0_19, %c0_20, %c0_21], %50 {strides = array<i32>} : memref<1x1x1xf32, #tpu.memory_space<vmem>>, vector<1x1x1xf32>,
    return
  }
  func.func @transform_0(%arg0: i32, %arg1: i32) -> (i32, i32) {
    %c0_i32 = arith.constant 0 : i32
    %c0_i32_0 = arith.constant 0 : i32
    return %arg1, %c0_i32 : i32, i32
  }
  func.func @transform_1(%arg0: i32, %arg1: i32) -> (i32, i32) {
    %c0_i32 = arith.constant 0 : i32
    %c0_i32_0 = arith.constant 0 : i32
    return %arg1, %c0_i32 : i32, i32
  }
  func.func @transform_2(%arg0: i32, %arg1: i32) -> (i32, i32, i32) {
    %c0_i32 = arith.constant 0 : i32
    %c0_i32_0 = arith.constant 0 : i32
    %c0_i32_1 = arith.constant 0 : i32
    return %arg0, %c0_i32, %c0_i32_0 : i32, i32, i32
  }
}

</mosaic_0001>

<llo_original>
// kernel: tpu_custom_call.1
$region0: #{tpu_custom_call.1}
  #allocation0 [shape = 'u32[]', space=smem, size = 0x4, offset = 0x4, fixed_abs, tag = 'smem constant byte address 0x4 - core index']
  #allocation1 [shape = 'u32[72,128]{1,0:T(1,128)}', space=vmem, size = 0x9000, scoped, tag = 'internal scratch']
  %s0 = inlined_call_operand.hbm [shape: f32[16,128], index: 0, kind: input, shape index: {}]
  %s1 = inlined_call_operand.hbm [shape: f32[16,128], index: 1, kind: input, shape index: {}]
  %s2 = inlined_call_operand.hbm [shape: f32[1,1,1], index: 2, kind: output, shape index: {}]
  %s3 = sld [smem:[#allocation0]]
  $region30: #{tpu_custom_call.1} parent=0
    _
  %s5 = ssub.s32 1, %s3
  %s6 = scalar_select 0, %s5, %s3
  $region1: #{tpu_custom_call.1} parent=0
    #allocation2 [shape = 'u8[8192]{0}', space=vmem, size = 0x2000, scoped, tag = 'input window, operand 0, single buffered']
    #allocation3 [shape = 's32[1]{0}', space=sflag, size = 0x4, scoped, tag = 'scoped memory for tpu_custom_call.1']
    #allocation4 [shape = 's32[1]{0}', space=sflag, size = 0x4, scoped, tag = 'scoped memory for tpu_custom_call.1']
    #allocation5 [shape = 'u8[8192]{0}', space=vmem, size = 0x2000, scoped, tag = 'input window, operand 1, single buffered']
    #allocation6 [shape = 's32[1]{0}', space=sflag, size = 0x4, scoped, tag = 'scoped memory for tpu_custom_call.1']
    #allocation7 [shape = 'u8[512]{0}', space=vmem, size = 0x400, scoped, tag = 'output window, operand 0, single buffered']
    %7 = vsyncpa [#allocation3], 0
    %8 = vsyncpa [#allocation6], 0
    %9 = vsyncpa [#allocation4], 0
    // Predicated region
    $region2: #{tpu_custom_call.1} parent=1 // pred_check
      _
    $region3: #{tpu_custom_call.1} parent=1 // pred_check_branch
      %11 = sbr.rel (0) target = $region5
    $region4: #{tpu_custom_call.1} parent=1 // pred_region
      %13 = vsyncadd [#allocation3], 0
      %s14 = sshll.u32 %s0, 4
      %s15 = int_to_ptr.hbm [resolvable:$true] %s14
      %s16 = sshll.u32 [#allocation2], 4
      %s17 = int_to_ptr.vmem [resolvable:$true] %s16
      %22 = dma.hbm_to_vmem [thread:$0]  %s15, 256, %s17, [#allocation3], 128, 128, 8
    $region5: #{tpu_custom_call.1} parent=1 // pred_fallthru
      _
    // Predicated region
    $region6: #{tpu_custom_call.1} parent=1 // pred_check
      _
    $region7: #{tpu_custom_call.1} parent=1 // pred_check_branch
      %24 = sbr.rel (0) target = $region9
    $region8: #{tpu_custom_call.1} parent=1 // pred_region
      %26 = vsyncadd [#allocation6], 0
      %s27 = sshll.u32 %s1, 4
      %s28 = int_to_ptr.hbm [resolvable:$true] %s27
      %s29 = sshll.u32 [#allocation5], 4
      %s30 = int_to_ptr.vmem [resolvable:$true] %s29
      %35 = dma.hbm_to_vmem [thread:$0]  %s28, 256, %s30, [#allocation6], 128, 128, 8
    $region9: #{tpu_custom_call.1} parent=1 // pred_fallthru
      _
    // Predicated region
    $region10: #{tpu_custom_call.1} parent=1 // pred_check
      _
    $region11: #{tpu_custom_call.1} parent=1 // pred_check_branch
      %37 = sbr.rel (0) target = $region13
    $region12: #{tpu_custom_call.1} parent=1 // pred_region
      %39 = dma.done [#allocation3], 256
    $region13: #{tpu_custom_call.1} parent=1 // pred_fallthru
      _
    // Predicated region
    $region14: #{tpu_custom_call.1} parent=1 // pred_check
      _
    $region15: #{tpu_custom_call.1} parent=1 // pred_check_branch
      %41 = sbr.rel (0) target = $region17
    $region16: #{tpu_custom_call.1} parent=1 // pred_region
      %43 = dma.done [#allocation6], 256
    $region17: #{tpu_custom_call.1} parent=1 // pred_fallthru
      _
    %p44 = scmp.eq.s32.totalorder 0, 0
    // Predicated region
    $region18: #{tpu_custom_call.1} parent=1 // pred_check
      %p45 = pneg %p44
    $region19: #{tpu_custom_call.1} parent=1 // pred_check_branch
      %47 = sbr.rel (%p45) target = $region21
    $region20: #{tpu_custom_call.1} parent=1 // pred_region
      %vm48 = vcmask 0
      %49 = vst.msk [vmem:[#allocation7] sm:$0x1] %vm48, 0.0
    $region21: #{tpu_custom_call.1} parent=1 // pred_fallthru
      _
    %v50 = vld [vmem:[#allocation2] sm:$0xff]
    %v51 = vld [vmem:[#allocation2 + $0x8] sm:$0xff]
    %v52 = vld [vmem:[#allocation5] sm:$0xff]
    %v53 = vld [vmem:[#allocation5 + $0x8] sm:$0xff]
    %v54 = vmul.f32 %v50, %v50
    %v55 = vmul.f32 %v51, %v51
    %56 = vadd.xlane.f32.xlu0 %v54
    %v57 = vpop.xlane.xlu0 %56
    %58 = vadd.xlane.f32.xlu0 %v55
    %v59 = vpop.xlane.xlu0 %58
    %v60 = vmul.f32 %v52, %v52
    %v61 = vmul.f32 %v53, %v53
    %62 = vadd.xlane.f32.xlu0 %v60
    %v63 = vpop.xlane.xlu0 %62
    %64 = vadd.xlane.f32.xlu0 %v61
    %v65 = vpop.xlane.xlu0 %64
    %v66 = vmul.f32 %v50, %v52
    %v67 = vmul.f32 %v51, %v53
    %68 = vadd.xlane.f32.xlu0 %v66
    %v69 = vpop.xlane.xlu0 %68
    %70 = vadd.xlane.f32.xlu0 %v67
    %v71 = vpop.xlane.xlu0 %70
    %v72 = vmax.f32 %v57, 1e-24
    %v73 = vmax.f32 %v59, 1e-24
    %v74 = vrsqrt.pop %v72
    %v75 = vmul.f32 %v74, %v72
    %v76 = vmul.f32 %v75, %v74
    %v77 = vmul.f32 0.5, %v76
    %v78 = vsub.f32 1.5, %v77
    %v79 = vmul.f32 %v74, %v78
    %vm80 = vweird.f32 %v72
    %vm81 = vweird.f32 %v74
    %vm82 = vmor %vm80, %vm81
    %v83 = vsel %vm82, %v74, %v79
    %v84 = vrsqrt.pop %v73
    %v85 = vmul.f32 %v84, %v73
    %v86 = vmul.f32 %v85, %v84
    %v87 = vmul.f32 0.5, %v86
    %v88 = vsub.f32 1.5, %v87
    %v89 = vmul.f32 %v84, %v88
    %vm90 = vweird.f32 %v73
    %vm91 = vweird.f32 %v84
    %vm92 = vmor %vm90, %vm91
    %v93 = vsel %vm92, %v84, %v89
    %v94 = vmax.f32 %v63, 1e-24
    %v95 = vmax.f32 %v65, 1e-24
    %v96 = vrsqrt.pop %v94
    %v97 = vmul.f32 %v96, %v94
    %v98 = vmul.f32 %v97, %v96
    %v99 = vmul.f32 0.5, %v98
    %v100 = vsub.f32 1.5, %v99
    %v101 = vmul.f32 %v96, %v100
    %vm102 = vweird.f32 %v94
    %vm103 = vweird.f32 %v96
    %vm104 = vmor %vm102, %vm103
    %v105 = vsel %vm104, %v96, %v101
    %v106 = vrsqrt.pop %v95
    %v107 = vmul.f32 %v106, %v95
    %v108 = vmul.f32 %v107, %v106
    %v109 = vmul.f32 0.5, %v108
    %v110 = vsub.f32 1.5, %v109
    %v111 = vmul.f32 %v106, %v110
    %vm112 = vweird.f32 %v95
    %vm113 = vweird.f32 %v106
    %vm114 = vmor %vm112, %vm113
    %v115 = vsel %vm114, %v106, %v111
    %v116 = vmul.f32 %v57, 1e+24
    %v117 = vmul.f32 %v59, 1e+24
    %v118 = vmin.f32 %v116, 1.0
    %v119 = vmin.f32 %v117, 1.0
    %v120 = vmul.f32 %v63, 1e+24
    %v121 = vmul.f32 %v65, 1e+24
    %v122 = vmin.f32 %v120, 1.0
    %v123 = vmin.f32 %v121, 1.0
    %v124 = vadd.f32 %v118, %v122
    %v125 = vadd.f32 %v119, %v123
    %v126 = vmul.f32 %v69, 2.0
    %v127 = vmul.f32 %v71, 2.0
    %v128 = vmul.f32 %v83, %v105
    %v129 = vmul.f32 %v93, %v115
    %v130 = vmul.f32 %v126, %v128
    %v131 = vmul.f32 %v127, %v129
    %v132 = vsub.f32 %v124, %v130
    %v133 = vsub.f32 %v125, %v131
    %s134 = sadd.s32 0, 0
    %s135 = smul.u32 %s134, 16
    %v136 = vlaneseq
    %v137 = vshrl.u32 %v136, 7
    %v138 = vadd.s32 %v137, 8
    %v139 = vstv %s135
    %v140 = vadd.s32 %v139, %v137
    %v141 = vadd.s32 %v139, %v138
    %vm142 = vcmp.lt.s32.totalorder %v140, 16
    %vm143 = vcmp.lt.s32.totalorder %v141, 16
    %v144 = vsel %vm142, %v132, 0.0
    %v145 = vsel %vm143, %v133, 0.0
    %v146 = vld [vmem:[#allocation7] sm:$0x1]
    %vm147 = vcmask 7168
    %v148 = vsel %vm147, %v144, 0.0
    %v149 = vsel %vm147, %v145, 0.0
    %v150 = vadd.f32 %v148, %v149
    %151 = vadd.xlane.f32.xlu0 %v150
    %v152 = vpop.xlane.xlu0 %151
    %v153 = vrot.slane %v152, 4
    %v154 = vadd.f32 %v152, %v153
    %v155 = vrot.slane %v154, 2
    %v156 = vadd.f32 %v154, %v155
    %v157 = vrot.slane %v156, 1
    %v158 = vadd.f32 %v156, %v157
    %s159 = vtos %v158
    %v160 = vstv %s159
    %v161 = vadd.f32 %v146, %v160
    %vm162 = vcmask 0
    %163 = vst.msk [vmem:[#allocation7] sm:$0x1] %vm162, %v161
    // Predicated region
    $region22: #{tpu_custom_call.1} parent=1 // pred_check
      _
    $region23: #{tpu_custom_call.1} parent=1 // pred_check_branch
      %165 = sbr.rel (0) target = $region25
    $region24: #{tpu_custom_call.1} parent=1 // pred_region
      %167 = vsyncadd [#allocation4], 0
      %s169 = sshll.u32 [#allocation7], 4
      %s170 = int_to_ptr.vmem [resolvable:$true] %s169
      %s171 = sshll.u32 %s2, 4
      %s172 = int_to_ptr.hbm [resolvable:$true] %s171
      %174 = dma.vmem_to_hbm [thread:$0]  %s170, 16, %s172, [#allocation4]
    $region25: #{tpu_custom_call.1} parent=1 // pred_fallthru
      _
    // Predicated region
    $region26: #{tpu_custom_call.1} parent=1 // pred_check
      _
    $region27: #{tpu_custom_call.1} parent=1 // pred_check_branch
      %176 = sbr.rel (0) target = $region29
    $region28: #{tpu_custom_call.1} parent=1 // pred_region
      %178 = dma.done [#allocation4], 16
    $region29: #{tpu_custom_call.1} parent=1 // pred_fallthru
      _
    %179 = vsyncpa [#allocation3], 1
    %180 = vsyncpa [#allocation6], 1
    %181 = vsyncpa [#allocation4], 1

</llo_original>
